<compile_context>
chip_gen: v7x
topology: tpu7x:2x2x1
jax: 0.10.0
libtpu: 0.0.40
codegen_flags: <defaults>
</compile_context>

<pallas_src>
import jax
import jax.numpy as jnp
from jax.experimental import pallas as pl
from jax.experimental.pallas import tpu as pltpu


def _round_up(x, m):
    return ((x + m - 1) // m) * m


def _mask_kernel(mask_ref, h_ref, o_ref):
    # mask_ref: (1, H)  -- precomputed sigmoid(weight), already in h.dtype
    # h_ref:    (tm, H)
    # o_ref:    (tm, H)
    # Pure VPU multiply; mask row broadcasts across the tile's sublanes.
    o_ref[...] = h_ref[...] * mask_ref[...]


def mask_layer_forward(h, weight, *, tm=None):
    """h: (..., H) float array, weight: (H,) float array."""
    orig_shape = h.shape
    H = weight.shape[0]
    assert orig_shape[-1] == H, "last dim of h must equal input_size"
    # TODO(synk): if a deployment ever uses H that is not a multiple of 128,
    # fold leading rows into the lane dim in this wrapper to keep stores
    # lane-dense (H=128+ is already fine).

    h2d = h.reshape(-1, H)                      # (M, H)
    M = h2d.shape[0]
    itemsize = jnp.dtype(h.dtype).itemsize

    # Grid-invariant mask: sigmoid in f32 for accuracy, then cast to h.dtype
    # so the in-kernel multiply stays in the activation dtype (bf16-native on
    # v6e/v7x; Mosaic handles the f32 path on v5e).
    mask2d = jax.nn.sigmoid(weight.astype(jnp.float32)).astype(h.dtype).reshape(1, H)

    if tm is None:
        # Target ~2 MiB per h tile. With double-buffered input + output tiles
        # that is ~8-10 MiB of VMEM: well under the 32 MiB scoped budget on
        # v6e/v7x and under the raised limit on v5e.
        target_tile_bytes = 2 << 20
        tm = max(8, target_tile_bytes // (H * itemsize))
        tm = min(tm, 4096)
        tm = min(tm, _round_up(M, 8))           # don't exceed the data size
        tm = _round_up(tm, 8)                   # sublane multiple

    # Handle M not divisible by tm: pad the flattened view so every grid step
    # sees a full tile, then slice the padding back off.
    M_pad = _round_up(M, tm)
    if M_pad != M:
        h2d = jnp.pad(h2d, ((0, M_pad - M), (0, 0)))

    out = pl.pallas_call(
        _mask_kernel,
        out_shape=jax.ShapeDtypeStruct((M_pad, H), h.dtype),
        grid_spec=pltpu.PrefetchScalarGridSpec(
            num_scalar_prefetch=0,
            grid=(M_pad // tm,),
            in_specs=[
                # mask: same (1, H) block for every grid step (stays in VMEM)
                pl.BlockSpec((1, H), lambda i: (0, 0)),
                # h: large row tiles, double-buffered by Pallas
                pl.BlockSpec((tm, H), lambda i: (i, 0)),
            ],
            out_specs=pl.BlockSpec((tm, H), lambda i: (i, 0)),
        ),
        compiler_params=pltpu.CompilerParams(
            # Single data-parallel axis -> shards across the 2 TCs on v7x.
            dimension_semantics=("parallel",),
            # Raise v5e's 16 MiB default scoped VMEM; 32 MiB is also within
            # v6e/v7x scoped limits and far above our ~10 MiB actual use.
            vmem_limit_bytes=32 << 20,
        ),
    )(mask2d, h2d)

    if M_pad != M:
        out = out[:M]
    return out.reshape(orig_shape)


if __name__ == "__main__":
    key = jax.random.PRNGKey(0)
    k_h, k_w, k_h2 = jax.random.split(key, 3)

    # Small shapes consistent with the module: h = (batch, seq, hidden)
    batch, seq, hidden = 2, 8, 128
    h = jax.random.normal(k_h, (batch, seq, hidden), dtype=jnp.float32)
    # Deterministic init mirroring torch's uniform_(-1.0, 1.0)
    weight = jax.random.uniform(k_w, (hidden,), dtype=jnp.float32,
                                minval=-1.0, maxval=1.0)

    out = mask_layer_forward(h, weight)
    out = jax.block_until_ready(out)
    ref = h * jax.nn.sigmoid(weight)
    assert out.shape == h.shape and out.dtype == h.dtype
    assert jnp.allclose(out, ref, atol=1e-6, rtol=1e-6)

    # Second check: leading-dim product NOT divisible by the tile (ragged tail
    # path via wrapper padding).
    h_ragged = jax.random.normal(k_h2, (2, 7, hidden), dtype=jnp.float32)
    out_r = jax.block_until_ready(mask_layer_forward(h_ragged, weight))
    ref_r = h_ragged * jax.nn.sigmoid(weight)
    assert out_r.shape == h_ragged.shape
    assert jnp.allclose(out_r, ref_r, atol=1e-6, rtol=1e-6)

    print("KERNEL_OK")
</pallas_src>

<mosaic_0001>
module attributes {stable_mosaic.version = 11 : i64} {
  func.func @_mask_kernel(%arg0: i32, %arg1: memref<1x128xf32, #tpu.memory_space<vmem>>, %arg2: memref<16x128xf32, #tpu.memory_space<vmem>>, %arg3: memref<16x128xf32, #tpu.memory_space<vmem>>) attributes {dimension_semantics = [#tpu.dimension_semantics<parallel>], iteration_bounds = array<i64: 1>, scalar_prefetch = 0 : i64, scratch_operands = 0 : i64, tpu.core_type = #tpu.core_type<tc>, window_params = [{pipeline_mode = #tpu.pipeline_mode<synchronous>, transform_indices = @transform_0, window_bounds = array<i64: 1, 128>}, {transform_indices = @transform_1, window_bounds = array<i64: 16, 128>}, {transform_indices = @transform_2, window_bounds = array<i64: 16, 128>}]} {
    %c0 = arith.constant 0 : index
    %c0_0 = arith.constant 0 : index
    %0 = vector.load %arg2[%c0, %c0_0] : memref<16x128xf32, #tpu.memory_space<vmem>>, vector<16x128xf32>
    %c0_1 = arith.constant 0 : index
    %c0_2 = arith.constant 0 : index
    %1 = vector.load %arg1[%c0_1, %c0_2] : memref<1x128xf32, #tpu.memory_space<vmem>>, vector<1x128xf32>
    %2 = vector.broadcast %1 : vector<1x128xf32> to vector<16x128xf32>
    %3 = arith.mulf %0, %2 : vector<16x128xf32>
    %c0_3 = arith.constant 0 : index
    %c0_4 = arith.constant 0 : index
    %4 = vector.load %arg3[%c0_3, %c0_4] : memref<16x128xf32, #tpu.memory_space<vmem>>, vector<16x128xf32>
    tpu.vector_store %arg3[%c0_3, %c0_4], %3 {strides = array<i32>} : memref<16x128xf32, #tpu.memory_space<vmem>>, vector<16x128xf32>,
    return
  }
  func.func @transform_0(%arg0: i32) -> (i32, i32) {
    %c0_i32 = arith.constant 0 : i32
    %c0_i32_0 = arith.constant 0 : i32
    %c0_i32_1 = arith.constant 0 : i32
    return %c0_i32, %c0_i32_0 : i32, i32
  }
  func.func @transform_1(%arg0: i32) -> (i32, i32) {
    %c0_i32 = arith.constant 0 : i32
    %c0_i32_0 = arith.constant 0 : i32
    return %arg0, %c0_i32 : i32, i32
  }
  func.func @transform_2(%arg0: i32) -> (i32, i32) {
    %c0_i32 = arith.constant 0 : i32
    %c0_i32_0 = arith.constant 0 : i32
    return %arg0, %c0_i32 : i32, i32
  }
}

</mosaic_0001>

<llo_original>
// kernel: tpu_custom_call.1
$region0: #{tpu_custom_call.1}
  #allocation0 [shape = 'u32[]', space=smem, size = 0x4, offset = 0x4, fixed_abs, tag = 'smem constant byte address 0x4 - core index']
  #allocation1 [shape = 'u32[144,128]{1,0:T(1,128)}', space=vmem, size = 0x12000, scoped, tag = 'internal scratch']
  %s0 = inlined_call_operand.hbm [shape: f32[1,128], index: 0, kind: input, shape index: {}]
  %s1 = inlined_call_operand.hbm [shape: f32[16,128], index: 1, kind: input, shape index: {}]
  %s2 = inlined_call_operand.hbm [shape: f32[16,128], index: 2, kind: output, shape index: {}]
  %s3 = sld [smem:[#allocation0]]
  $region26: #{tpu_custom_call.1} parent=0
    _
  %s5 = ssub.s32 1, %s3
  %s6 = scalar_select 0, %s5, %s3
  $region1: #{tpu_custom_call.1} parent=0
    #allocation2 [shape = 'u8[512]{0}', space=vmem, size = 0x400, scoped, tag = 'input window, operand 0, single buffered']
    #allocation3 [shape = 's32[1]{0}', space=sflag, size = 0x4, scoped, tag = 'scoped memory for tpu_custom_call.1']
    #allocation4 [shape = 's32[1]{0}', space=sflag, size = 0x4, scoped, tag = 'scoped memory for tpu_custom_call.1']
    #allocation5 [shape = 'u8[8192]{0}', space=vmem, size = 0x2000, scoped, tag = 'input window, operand 1, single buffered']
    #allocation6 [shape = 's32[1]{0}', space=sflag, size = 0x4, scoped, tag = 'scoped memory for tpu_custom_call.1']
    #allocation7 [shape = 'u8[8192]{0}', space=vmem, size = 0x2000, scoped, tag = 'output window, operand 0, single buffered']
    %7 = vsyncpa [#allocation3], 0
    %8 = vsyncpa [#allocation6], 0
    %9 = vsyncpa [#allocation4], 0
    // Predicated region
    $region2: #{tpu_custom_call.1} parent=1 // pred_check
      _
    $region3: #{tpu_custom_call.1} parent=1 // pred_check_branch
      %11 = sbr.rel (0) target = $region5
    $region4: #{tpu_custom_call.1} parent=1 // pred_region
      %s13 = ssub.s32 16, 16
      %14 = vsyncadd [#allocation3], %s13
      %s16 = sshll.u32 [#allocation2], 4
      %s17 = int_to_ptr.vmem [resolvable:$true] %s16
      %19 = dma.hbm_to_vmem [thread:$0]  %s0, 16, %s17, [#allocation3]
    $region5: #{tpu_custom_call.1} parent=1 // pred_fallthru
      _
    // Predicated region
    $region6: #{tpu_custom_call.1} parent=1 // pred_check
      _
    $region7: #{tpu_custom_call.1} parent=1 // pred_check_branch
      %21 = sbr.rel (0) target = $region9
    $region8: #{tpu_custom_call.1} parent=1 // pred_region
      %s23 = ssub.s32 256, 256
      %24 = vsyncadd [#allocation6], %s23
      %s25 = sshll.u32 [#allocation5], 4
      %s26 = int_to_ptr.vmem [resolvable:$true] %s25
      %31 = dma.hbm_to_vmem [thread:$0]  %s1, 256, %s26, [#allocation6], 128, 128, 8
    $region9: #{tpu_custom_call.1} parent=1 // pred_fallthru
      _
    // Predicated region
    $region10: #{tpu_custom_call.1} parent=1 // pred_check
      _
    $region11: #{tpu_custom_call.1} parent=1 // pred_check_branch
      %33 = sbr.rel (0) target = $region13
    $region12: #{tpu_custom_call.1} parent=1 // pred_region
      %34 = dma.done [#allocation3], 16
    $region13: #{tpu_custom_call.1} parent=1 // pred_fallthru
      _
    // Predicated region
    $region14: #{tpu_custom_call.1} parent=1 // pred_check
      _
    $region15: #{tpu_custom_call.1} parent=1 // pred_check_branch
      %36 = sbr.rel (0) target = $region17
    $region16: #{tpu_custom_call.1} parent=1 // pred_region
      %37 = dma.done [#allocation6], 256
    $region17: #{tpu_custom_call.1} parent=1 // pred_fallthru
      _
    %v38 = vld [vmem:[#allocation5] sm:$0xff]
    %v39 = vld [vmem:[#allocation5 + $0x8] sm:$0xff]
    %v40 = vld [vmem:[#allocation2] sm:$0x1]
    %v42 = vlaneseq
    %v43 = vshrl.u32 %v42, 7
    %v44 = vsub.s32 0, %v43
    %v45 = vrot.slane %v40, %v44
    %v47 = vmul.f32 %v38, %v45
    %v48 = vmul.f32 %v39, %v45
    %49 = vst [vmem:[#allocation7] sm:$0xff] %v47
    %50 = vst [vmem:[#allocation7 + $0x8] sm:$0xff] %v48
    // Predicated region
    $region18: #{tpu_custom_call.1} parent=1 // pred_check
      _
    $region19: #{tpu_custom_call.1} parent=1 // pred_check_branch
      %52 = sbr.rel (0) target = $region21
    $region20: #{tpu_custom_call.1} parent=1 // pred_region
      %s54 = ssub.s32 256, 256
      %55 = vsyncadd [#allocation4], %s54
      %s56 = sshll.u32 [#allocation7], 4
      %s57 = int_to_ptr.vmem [resolvable:$true] %s56
      %62 = dma.vmem_to_hbm [thread:$0]  %s57, 256, %s2, [#allocation4], 128, 128, 8
    $region21: #{tpu_custom_call.1} parent=1 // pred_fallthru
      _
    // Predicated region
    $region22: #{tpu_custom_call.1} parent=1 // pred_check
      _
    $region23: #{tpu_custom_call.1} parent=1 // pred_check_branch
      %64 = sbr.rel (0) target = $region25
    $region24: #{tpu_custom_call.1} parent=1 // pred_region
      %65 = dma.done [#allocation4], 256
    $region25: #{tpu_custom_call.1} parent=1 // pred_fallthru
      _
    %66 = vsyncpa [#allocation3], 1
    %67 = vsyncpa [#allocation6], 1
    %68 = vsyncpa [#allocation4], 1

</llo_original>
